<compile_context>
chip_gen: v5e
topology: v5e:2x2
jax: 0.10.0
libtpu: 0.0.40
codegen_flags: <defaults>
</compile_context>

<pallas_src>
import jax
import jax.numpy as jnp
from jax.experimental import pallas as pl
from jax.experimental.pallas import tpu as pltpu

D_IN = 1024
D_HID = 256
D_OUT = 1
TB_DEFAULT = 512  # batch tile: 2 MiB x block, double-buffers on every chip.


def _round_up(n, m):
    return ((n + m - 1) // m) * m


def mlp_v_kernel(x_ref, w1t_ref, w4_ref, o_ref):
    # fc1 + ReLU: (TB, 1024) @ (1024, 256) on the MXU with f32 accumulation.
    # TODO(synk): cast x/w1t to bf16 here (keep f32 accumulation) if precision
    # allows — ~2-4x MXU throughput and half the x DMA bytes.
    h = jnp.dot(x_ref[...], w1t_ref[...], preferred_element_type=jnp.float32)
    h = jnp.maximum(h, 0.0)
    # fc4 + ReLU: N=1, so use a VPU multiply + lane reduction instead of a
    # 1-column MXU matmul.  w4_ref is the lane-dense (1, 256) weight row.
    y = jnp.sum(h * w4_ref[...], axis=-1, keepdims=True)
    y = jnp.maximum(y, 0.0)
    o_ref[...] = y.astype(o_ref.dtype)


def mlp_v_forward(x, w1t, w4, *, tb=TB_DEFAULT):
    """x: (B, 1024); w1t: (1024, 256) = fc1.weight.T; w4: (1, 256) = fc4.weight."""
    B = x.shape[0]
    TB = min(tb, _round_up(B, 8))       # tile rows must be a multiple of 8 sublanes
    B_pad = _round_up(B, TB)            # pad so the grid covers B exactly
    if B_pad != B:
        x = jnp.pad(x, ((0, B_pad - B), (0, 0)))

    out = pl.pallas_call(
        mlp_v_kernel,
        out_shape=jax.ShapeDtypeStruct((B_pad, D_OUT), x.dtype),
        grid=(B_pad // TB,),
        in_specs=[
            pl.BlockSpec((TB, D_IN), lambda i: (i, 0)),        # x tile per step
            pl.BlockSpec((D_IN, D_HID), lambda i: (0, 0)),     # w1t resident
            pl.BlockSpec((1, D_HID), lambda i: (0, 0)),        # w4 row resident
        ],
        out_specs=pl.BlockSpec((TB, D_OUT), lambda i: (i, 0)),
        compiler_params=pltpu.CompilerParams(
            dimension_semantics=("parallel",),                 # megacore on v7x
            vmem_limit_bytes=32 * 1024 * 1024,
        ),
    )(x, w1t, w4)
    return out[:B]


def reference_forward(x, w1, w4):
    h = jnp.maximum(x @ w1.T, 0.0)
    return jnp.maximum(h @ w4.T, 0.0)


if __name__ == "__main__":
    key = jax.random.PRNGKey(0)
    kx, k1, k4 = jax.random.split(key, 3)

    B = 8
    x = jax.random.normal(kx, (B, D_IN), dtype=jnp.float32)
    # Deterministic synthetic weights in PyTorch Linear layout (out, in).
    w1 = jax.random.normal(k1, (D_HID, D_IN), dtype=jnp.float32) * (1.0 / D_IN**0.5)
    w4 = jax.random.normal(k4, (D_OUT, D_HID), dtype=jnp.float32) * (1.0 / D_HID**0.5)

    # Transpose fc1 ONCE outside the per-call hot path (no per-call w1.T op);
    # fc4's (1, 256) PyTorch layout is already the lane-dense row we need.
    w1t = jnp.asarray(w1.T)  # (1024, 256)

    fwd = jax.jit(mlp_v_forward)
    out = jax.block_until_ready(fwd(x, w1t, w4))

    ref = reference_forward(x, w1, w4)
    assert out.shape == (B, D_OUT)
    assert jnp.allclose(out, ref, atol=1e-3, rtol=1e-3), float(
        jnp.max(jnp.abs(out - ref))
    )

    print("KERNEL_OK")
</pallas_src>

<mosaic_0001>
module attributes {stable_mosaic.version = 11 : i64} {
  func.func @mlp_v_kernel(%arg0: i32, %arg1: memref<8x1024xf32, #tpu.memory_space<vmem>>, %arg2: memref<1024x256xf32, #tpu.memory_space<vmem>>, %arg3: memref<1x256xf32, #tpu.memory_space<vmem>>, %arg4: memref<8x1xf32, #tpu.memory_space<vmem>>) attributes {dimension_semantics = [#tpu.dimension_semantics<parallel>], iteration_bounds = array<i64: 1>, scalar_prefetch = 0 : i64, scratch_operands = 0 : i64, tpu.core_type = #tpu.core_type<tc>, window_params = [{transform_indices = @transform_0, window_bounds = array<i64: 8, 1024>}, {pipeline_mode = #tpu.pipeline_mode<synchronous>, transform_indices = @transform_1, window_bounds = array<i64: 1024, 256>}, {pipeline_mode = #tpu.pipeline_mode<synchronous>, transform_indices = @transform_2, window_bounds = array<i64: 1, 256>}, {transform_indices = @transform_3, window_bounds = array<i64: 8, 1>}]} {
    %c0 = arith.constant 0 : index
    %c0_0 = arith.constant 0 : index
    %0 = vector.load %arg1[%c0, %c0_0] : memref<8x1024xf32, #tpu.memory_space<vmem>>, vector<8x1024xf32>
    %c0_1 = arith.constant 0 : index
    %c0_2 = arith.constant 0 : index
    %1 = vector.load %arg2[%c0_1, %c0_2] : memref<1024x256xf32, #tpu.memory_space<vmem>>, vector<1024x256xf32>
    %cst = arith.constant dense<0.000000e+00> : vector<8x256xf32>
    %2 = tpu.matmul %0, %1, %cst {dimension_numbers = #tpu.dot_dimension_numbers<[1], [0], [0], [1], [0, 0, 1, 1], [], []>} : vector<8x1024xf32>, vector<1024x256xf32>, vector<8x256xf32> -> vector<8x256xf32>
    %cst_3 = arith.constant 0.000000e+00 : f32
    %3 = vector.broadcast %cst_3 : f32 to vector<8x256xf32>
    %4 = arith.maximumf %2, %3 : vector<8x256xf32>
    %c0_4 = arith.constant 0 : index
    %c0_5 = arith.constant 0 : index
    %5 = vector.load %arg3[%c0_4, %c0_5] : memref<1x256xf32, #tpu.memory_space<vmem>>, vector<1x256xf32>
    %6 = vector.broadcast %5 : vector<1x256xf32> to vector<8x256xf32>
    %7 = arith.mulf %4, %6 : vector<8x256xf32>
    %cst_6 = arith.constant dense<0.000000e+00> : vector<8xf32>
    %8 = vector.multi_reduction <add>, %7, %cst_6 [1] : vector<8x256xf32> to vector<8xf32>
    %9 = vector.shape_cast %8 : vector<8xf32> to vector<8x1xf32>
    %cst_7 = arith.constant 0.000000e+00 : f32
    %10 = vector.broadcast %cst_7 : f32 to vector<8x1xf32>
    %11 = arith.maximumf %9, %10 : vector<8x1xf32>
    %c0_8 = arith.constant 0 : index
    %c0_9 = arith.constant 0 : index
    %12 = vector.load %arg4[%c0_8, %c0_9] : memref<8x1xf32, #tpu.memory_space<vmem>>, vector<8x1xf32>
    tpu.vector_store %arg4[%c0_8, %c0_9], %11 {strides = array<i32>} : memref<8x1xf32, #tpu.memory_space<vmem>>, vector<8x1xf32>,
    return
  }
  func.func @transform_0(%arg0: i32) -> (i32, i32) {
    %c0_i32 = arith.constant 0 : i32
    %c0_i32_0 = arith.constant 0 : i32
    return %arg0, %c0_i32 : i32, i32
  }
  func.func @transform_1(%arg0: i32) -> (i32, i32) {
    %c0_i32 = arith.constant 0 : i32
    %c0_i32_0 = arith.constant 0 : i32
    %c0_i32_1 = arith.constant 0 : i32
    return %c0_i32, %c0_i32_0 : i32, i32
  }
  func.func @transform_2(%arg0: i32) -> (i32, i32) {
    %c0_i32 = arith.constant 0 : i32
    %c0_i32_0 = arith.constant 0 : i32
    %c0_i32_1 = arith.constant 0 : i32
    return %c0_i32, %c0_i32_0 : i32, i32
  }
  func.func @transform_3(%arg0: i32) -> (i32, i32) {
    %c0_i32 = arith.constant 0 : i32
    %c0_i32_0 = arith.constant 0 : i32
    return %arg0, %c0_i32 : i32, i32
  }
}

</mosaic_0001>

<llo_original>
// kernel: mlp_v_forward.1
$region0: #{mlp_v_forward.1}
  #allocation0 [shape = 'u32[]', space=smem, size = 0x4, offset = 0x4, fixed_abs, tag = 'smem constant byte address 0x4 - core index']
  #allocation1 [shape = 'u32[72,128]{1,0:T(1,128)}', space=vmem, size = 0x9000, scoped, tag = 'internal scratch']
  %s0 = inlined_call_operand.hbm [shape: f32[8,1024], index: 0, kind: input, shape index: {}]
  %s1 = inlined_call_operand.hbm [shape: f32[1024,256], index: 1, kind: input, shape index: {}]
  %s2 = inlined_call_operand.hbm [shape: f32[1,256], index: 2, kind: input, shape index: {}]
  %s3 = inlined_call_operand.vmem [shape: f32[8,1], index: 3, kind: output, shape index: {}]
  %s4 = sld [smem:[#allocation0]]
  $region34: #{mlp_v_forward.1} parent=0
    _
  %s6 = ssub.s32 1, %s4
  %s7 = scalar_select 0, %s6, %s4
  $region1: #{mlp_v_forward.1} parent=0
    #allocation2 [shape = 'u8[32768]{0}', space=vmem, size = 0x8000, scoped, tag = 'input window, operand 0, single buffered']
    #allocation3 [shape = 's32[1]{0}', space=sflag, size = 0x4, scoped, tag = 'scoped memory for mlp_v_forward.1']
    #allocation4 [shape = 'u8[1048576]{0}', space=vmem, size = 0x100000, scoped, tag = 'input window, operand 1, single buffered']
    #allocation5 [shape = 's32[1]{0}', space=sflag, size = 0x4, scoped, tag = 'scoped memory for mlp_v_forward.1']
    #allocation6 [shape = 'u8[1024]{0}', space=vmem, size = 0x400, scoped, tag = 'input window, operand 2, single buffered']
    %8 = vsyncpa [#allocation3], 0
    %9 = vsyncpa [#allocation5], 0
    // Predicated region
    $region2: #{mlp_v_forward.1} parent=1 // pred_check
      _
    $region3: #{mlp_v_forward.1} parent=1 // pred_check_branch
      %11 = sbr.rel (0) target = $region5
    $region4: #{mlp_v_forward.1} parent=1 // pred_region
      %13 = vsyncadd [#allocation3], 0
      %s15 = sshll.u32 %s0, 4
      %s16 = int_to_ptr.hbm [resolvable:$true] %s15
      %s17 = sshll.u32 [#allocation2], 4
      %s18 = int_to_ptr.vmem [resolvable:$true] %s17
      %20 = dma.hbm_to_vmem [thread:$0]  %s16, 1024, %s18, [#allocation3]
    $region5: #{mlp_v_forward.1} parent=1 // pred_fallthru
      _
    // Predicated region
    $region6: #{mlp_v_forward.1} parent=1 // pred_check
      _
    $region7: #{mlp_v_forward.1} parent=1 // pred_check_branch
      %22 = sbr.rel (0) target = $region9
    $region8: #{mlp_v_forward.1} parent=1 // pred_region
      %24 = vsyncadd [#allocation5], 0
      %s25 = sshll.u32 %s1, 4
      %s26 = int_to_ptr.hbm [resolvable:$true] %s25
      %s27 = sshll.u32 [#allocation4], 4
      %s28 = int_to_ptr.vmem [resolvable:$true] %s27
      %33 = dma.hbm_to_vmem [thread:$0]  %s26, 32768, %s28, [#allocation5], 256, 256, 16
    $region9: #{mlp_v_forward.1} parent=1 // pred_fallthru
      _
    // Predicated region
    $region10: #{mlp_v_forward.1} parent=1 // pred_check
      _
    $region11: #{mlp_v_forward.1} parent=1 // pred_check_branch
      %35 = sbr.rel (0) target = $region13
    $region12: #{mlp_v_forward.1} parent=1 // pred_region
      %37 = vsyncadd [#allocation5], 0
      %s39 = sshll.u32 %s2, 4
      %s40 = int_to_ptr.hbm [resolvable:$true] %s39
      %s41 = sshll.u32 [#allocation6], 4
      %s42 = int_to_ptr.vmem [resolvable:$true] %s41
      %44 = dma.hbm_to_vmem [thread:$0]  %s40, 32, %s42, [#allocation5]
    $region13: #{mlp_v_forward.1} parent=1 // pred_fallthru
      _
    // Predicated region
    $region14: #{mlp_v_forward.1} parent=1 // pred_check
      _
    $region15: #{mlp_v_forward.1} parent=1 // pred_check_branch
      %46 = sbr.rel (0) target = $region17
    $region16: #{mlp_v_forward.1} parent=1 // pred_region
      %48 = dma.done [#allocation3], 1024
    $region17: #{mlp_v_forward.1} parent=1 // pred_fallthru
      _
    // Predicated region
    $region18: #{mlp_v_forward.1} parent=1 // pred_check
      _
    $region19: #{mlp_v_forward.1} parent=1 // pred_check_branch
      %50 = sbr.rel (0) target = $region21
    $region20: #{mlp_v_forward.1} parent=1 // pred_region
      %52 = dma.done [#allocation5], 32768
    $region21: #{mlp_v_forward.1} parent=1 // pred_fallthru
      _
    // Predicated region
    $region22: #{mlp_v_forward.1} parent=1 // pred_check
      _
    $region23: #{mlp_v_forward.1} parent=1 // pred_check_branch
      %54 = sbr.rel (0) target = $region25
    $region24: #{mlp_v_forward.1} parent=1 // pred_region
      %56 = dma.done [#allocation5], 32
    $region25: #{mlp_v_forward.1} parent=1 // pred_fallthru
      _
    %v57 = vld [vmem:[#allocation2] sm:$0xff]
    %v58 = vld [vmem:[#allocation2 + $0x8] sm:$0xff]
    %v59 = vld [vmem:[#allocation2 + $0x10] sm:$0xff]
    %v60 = vld [vmem:[#allocation2 + $0x18] sm:$0xff]
    %v61 = vld [vmem:[#allocation2 + $0x20] sm:$0xff]
    %v62 = vld [vmem:[#allocation2 + $0x28] sm:$0xff]
    %v63 = vld [vmem:[#allocation2 + $0x30] sm:$0xff]
    %v64 = vld [vmem:[#allocation2 + $0x38] sm:$0xff]
    %v65 = vld [vmem:[#allocation4] sm:$0xff]
    %v66 = vld [vmem:[#allocation4 + $0x8] sm:$0xff]
    %v67 = vld [vmem:[#allocation4 + $0x10] sm:$0xff]
    %v68 = vld [vmem:[#allocation4 + $0x18] sm:$0xff]
    %v69 = vld [vmem:[#allocation4 + $0x20] sm:$0xff]
    %v70 = vld [vmem:[#allocation4 + $0x28] sm:$0xff]
    %v71 = vld [vmem:[#allocation4 + $0x30] sm:$0xff]
    %v72 = vld [vmem:[#allocation4 + $0x38] sm:$0xff]
    %v73 = vld [vmem:[#allocation4 + $0x40] sm:$0xff]
    %v74 = vld [vmem:[#allocation4 + $0x48] sm:$0xff]
    %v75 = vld [vmem:[#allocation4 + $0x50] sm:$0xff]
    %v76 = vld [vmem:[#allocation4 + $0x58] sm:$0xff]
    %v77 = vld [vmem:[#allocation4 + $0x60] sm:$0xff]
    %v78 = vld [vmem:[#allocation4 + $0x68] sm:$0xff]
    %v79 = vld [vmem:[#allocation4 + $0x70] sm:$0xff]
    %v80 = vld [vmem:[#allocation4 + $0x78] sm:$0xff]
    %v81 = vld [vmem:[#allocation4 + $0x80] sm:$0xff]
    %v82 = vld [vmem:[#allocation4 + $0x88] sm:$0xff]
    %v83 = vld [vmem:[#allocation4 + $0x90] sm:$0xff]
    %v84 = vld [vmem:[#allocation4 + $0x98] sm:$0xff]
    %v85 = vld [vmem:[#allocation4 + $0xa0] sm:$0xff]
    %v86 = vld [vmem:[#allocation4 + $0xa8] sm:$0xff]
    %v87 = vld [vmem:[#allocation4 + $0xb0] sm:$0xff]
    %v88 = vld [vmem:[#allocation4 + $0xb8] sm:$0xff]
    %v89 = vld [vmem:[#allocation4 + $0xc0] sm:$0xff]
    %v90 = vld [vmem:[#allocation4 + $0xc8] sm:$0xff]
    %v91 = vld [vmem:[#allocation4 + $0xd0] sm:$0xff]
    %v92 = vld [vmem:[#allocation4 + $0xd8] sm:$0xff]
    %v93 = vld [vmem:[#allocation4 + $0xe0] sm:$0xff]
    %v94 = vld [vmem:[#allocation4 + $0xe8] sm:$0xff]
    %v95 = vld [vmem:[#allocation4 + $0xf0] sm:$0xff]
    %v96 = vld [vmem:[#allocation4 + $0xf8] sm:$0xff]
    %v97 = vld [vmem:[#allocation4 + $0x100] sm:$0xff]
    %v98 = vld [vmem:[#allocation4 + $0x108] sm:$0xff]
    %v99 = vld [vmem:[#allocation4 + $0x110] sm:$0xff]
    %v100 = vld [vmem:[#allocation4 + $0x118] sm:$0xff]
    %v101 = vld [vmem:[#allocation4 + $0x120] sm:$0xff]
    %v102 = vld [vmem:[#allocation4 + $0x128] sm:$0xff]
    %v103 = vld [vmem:[#allocation4 + $0x130] sm:$0xff]
    %v104 = vld [vmem:[#allocation4 + $0x138] sm:$0xff]
    %v105 = vld [vmem:[#allocation4 + $0x140] sm:$0xff]
    %v106 = vld [vmem:[#allocation4 + $0x148] sm:$0xff]
    %v107 = vld [vmem:[#allocation4 + $0x150] sm:$0xff]
    %v108 = vld [vmem:[#allocation4 + $0x158] sm:$0xff]
    %v109 = vld [vmem:[#allocation4 + $0x160] sm:$0xff]
    %v110 = vld [vmem:[#allocation4 + $0x168] sm:$0xff]
    %v111 = vld [vmem:[#allocation4 + $0x170] sm:$0xff]
    %v112 = vld [vmem:[#allocation4 + $0x178] sm:$0xff]
    %v113 = vld [vmem:[#allocation4 + $0x180] sm:$0xff]
    %v114 = vld [vmem:[#allocation4 + $0x188] sm:$0xff]
    %v115 = vld [vmem:[#allocation4 + $0x190] sm:$0xff]
    %v116 = vld [vmem:[#allocation4 + $0x198] sm:$0xff]
    %v117 = vld [vmem:[#allocation4 + $0x1a0] sm:$0xff]
    %v118 = vld [vmem:[#allocation4 + $0x1a8] sm:$0xff]
    %v119 = vld [vmem:[#allocation4 + $0x1b0] sm:$0xff]
    %v120 = vld [vmem:[#allocation4 + $0x1b8] sm:$0xff]
    %v121 = vld [vmem:[#allocation4 + $0x1c0] sm:$0xff]
    %v122 = vld [vmem:[#allocation4 + $0x1c8] sm:$0xff]
    %v123 = vld [vmem:[#allocation4 + $0x1d0] sm:$0xff]
    %v124 = vld [vmem:[#allocation4 + $0x1d8] sm:$0xff]
    %v125 = vld [vmem:[#allocation4 + $0x1e0] sm:$0xff]
    %v126 = vld [vmem:[#allocation4 + $0x1e8] sm:$0xff]
    %v127 = vld [vmem:[#allocation4 + $0x1f0] sm:$0xff]
    %v128 = vld [vmem:[#allocation4 + $0x1f8] sm:$0xff]
    %v129 = vld [vmem:[#allocation4 + $0x200] sm:$0xff]
    %v130 = vld [vmem:[#allocation4 + $0x208] sm:$0xff]
    %v131 = vld [vmem:[#allocation4 + $0x210] sm:$0xff]
    %v132 = vld [vmem:[#allocation4 + $0x218] sm:$0xff]
    %v133 = vld [vmem:[#allocation4 + $0x220] sm:$0xff]
    %v134 = vld [vmem:[#allocation4 + $0x228] sm:$0xff]
    %v135 = vld [vmem:[#allocation4 + $0x230] sm:$0xff]
    %v136 = vld [vmem:[#allocation4 + $0x238] sm:$0xff]
    %v137 = vld [vmem:[#allocation4 + $0x240] sm:$0xff]
    %v138 = vld [vmem:[#allocation4 + $0x248] sm:$0xff]
    %v139 = vld [vmem:[#allocation4 + $0x250] sm:$0xff]
    %v140 = vld [vmem:[#allocation4 + $0x258] sm:$0xff]
    %v141 = vld [vmem:[#allocation4 + $0x260] sm:$0xff]
    %v142 = vld [vmem:[#allocation4 + $0x268] sm:$0xff]
    %v143 = vld [vmem:[#allocation4 + $0x270] sm:$0xff]
    %v144 = vld [vmem:[#allocation4 + $0x278] sm:$0xff]
    %v145 = vld [vmem:[#allocation4 + $0x280] sm:$0xff]
    %v146 = vld [vmem:[#allocation4 + $0x288] sm:$0xff]
    %v147 = vld [vmem:[#allocation4 + $0x290] sm:$0xff]
    %v148 = vld [vmem:[#allocation4 + $0x298] sm:$0xff]
    %v149 = vld [vmem:[#allocation4 + $0x2a0] sm:$0xff]
    %v150 = vld [vmem:[#allocation4 + $0x2a8] sm:$0xff]
    %v151 = vld [vmem:[#allocation4 + $0x2b0] sm:$0xff]
    %v152 = vld [vmem:[#allocation4 + $0x2b8] sm:$0xff]
    %v153 = vld [vmem:[#allocation4 + $0x2c0] sm:$0xff]
    %v154 = vld [vmem:[#allocation4 + $0x2c8] sm:$0xff]
    %v155 = vld [vmem:[#allocation4 + $0x2d0] sm:$0xff]
    %v156 = vld [vmem:[#allocation4 + $0x2d8] sm:$0xff]
    %v157 = vld [vmem:[#allocation4 + $0x2e0] sm:$0xff]
    %v158 = vld [vmem:[#allocation4 + $0x2e8] sm:$0xff]
    %v159 = vld [vmem:[#allocation4 + $0x2f0] sm:$0xff]
    %v160 = vld [vmem:[#allocation4 + $0x2f8] sm:$0xff]
    %v161 = vld [vmem:[#allocation4 + $0x300] sm:$0xff]
    %v162 = vld [vmem:[#allocation4 + $0x308] sm:$0xff]
    %v163 = vld [vmem:[#allocation4 + $0x310] sm:$0xff]
    %v164 = vld [vmem:[#allocation4 + $0x318] sm:$0xff]
    %v165 = vld [vmem:[#allocation4 + $0x320] sm:$0xff]
    %v166 = vld [vmem:[#allocation4 + $0x328] sm:$0xff]
    %v167 = vld [vmem:[#allocation4 + $0x330] sm:$0xff]
    %v168 = vld [vmem:[#allocation4 + $0x338] sm:$0xff]
    %v169 = vld [vmem:[#allocation4 + $0x340] sm:$0xff]
    %v170 = vld [vmem:[#allocation4 + $0x348] sm:$0xff]
    %v171 = vld [vmem:[#allocation4 + $0x350] sm:$0xff]
    %v172 = vld [vmem:[#allocation4 + $0x358] sm:$0xff]
    %v173 = vld [vmem:[#allocation4 + $0x360] sm:$0xff]
    %v174 = vld [vmem:[#allocation4 + $0x368] sm:$0xff]
    %v175 = vld [vmem:[#allocation4 + $0x370] sm:$0xff]
    %v176 = vld [vmem:[#allocation4 + $0x378] sm:$0xff]
    %v177 = vld [vmem:[#allocation4 + $0x380] sm:$0xff]
    %v178 = vld [vmem:[#allocation4 + $0x388] sm:$0xff]
    %v179 = vld [vmem:[#allocation4 + $0x390] sm:$0xff]
    %v180 = vld [vmem:[#allocation4 + $0x398] sm:$0xff]
    %v181 = vld [vmem:[#allocation4 + $0x3a0] sm:$0xff]
    %v182 = vld [vmem:[#allocation4 + $0x3a8] sm:$0xff]
    %v183 = vld [vmem:[#allocation4 + $0x3b0] sm:$0xff]
    %v184 = vld [vmem:[#allocation4 + $0x3b8] sm:$0xff]
    %v185 = vld [vmem:[#allocation4 + $0x3c0] sm:$0xff]
    %v186 = vld [vmem:[#allocation4 + $0x3c8] sm:$0xff]
    %v187 = vld [vmem:[#allocation4 + $0x3d0] sm:$0xff]
    %v188 = vld [vmem:[#allocation4 + $0x3d8] sm:$0xff]
    %v189 = vld [vmem:[#allocation4 + $0x3e0] sm:$0xff]
    %v190 = vld [vmem:[#allocation4 + $0x3e8] sm:$0xff]
    %v191 = vld [vmem:[#allocation4 + $0x3f0] sm:$0xff]
    %v192 = vld [vmem:[#allocation4 + $0x3f8] sm:$0xff]
    %v193 = vld [vmem:[#allocation4 + $0x400] sm:$0xff]
    %v194 = vld [vmem:[#allocation4 + $0x408] sm:$0xff]
    %v195 = vld [vmem:[#allocation4 + $0x410] sm:$0xff]
    %v196 = vld [vmem:[#allocation4 + $0x418] sm:$0xff]
    %v197 = vld [vmem:[#allocation4 + $0x420] sm:$0xff]
    %v198 = vld [vmem:[#allocation4 + $0x428] sm:$0xff]
    %v199 = vld [vmem:[#allocation4 + $0x430] sm:$0xff]
    %v200 = vld [vmem:[#allocation4 + $0x438] sm:$0xff]
    %v201 = vld [vmem:[#allocation4 + $0x440] sm:$0xff]
    %v202 = vld [vmem:[#allocation4 + $0x448] sm:$0xff]
    %v203 = vld [vmem:[#allocation4 + $0x450] sm:$0xff]
    %v204 = vld [vmem:[#allocation4 + $0x458] sm:$0xff]
    %v205 = vld [vmem:[#allocation4 + $0x460] sm:$0xff]
    %v206 = vld [vmem:[#allocation4 + $0x468] sm:$0xff]
    %v207 = vld [vmem:[#allocation4 + $0x470] sm:$0xff]
    %v208 = vld [vmem:[#allocation4 + $0x478] sm:$0xff]
    %v209 = vld [vmem:[#allocation4 + $0x480] sm:$0xff]
    %v210 = vld [vmem:[#allocation4 + $0x488] sm:$0xff]
    %v211 = vld [vmem:[#allocation4 + $0x490] sm:$0xff]
    %v212 = vld [vmem:[#allocation4 + $0x498] sm:$0xff]
    %v213 = vld [vmem:[#allocation4 + $0x4a0] sm:$0xff]
    %v214 = vld [vmem:[#allocation4 + $0x4a8] sm:$0xff]
    %v215 = vld [vmem:[#allocation4 + $0x4b0] sm:$0xff]
    %v216 = vld [vmem:[#allocation4 + $0x4b8] sm:$0xff]
    %v217 = vld [vmem:[#allocation4 + $0x4c0] sm:$0xff]
    %v218 = vld [vmem:[#allocation4 + $0x4c8] sm:$0xff]
    %v219 = vld [vmem:[#allocation4 + $0x4d0] sm:$0xff]
    %v220 = vld [vmem:[#allocation4 + $0x4d8] sm:$0xff]
    %v221 = vld [vmem:[#allocation4 + $0x4e0] sm:$0xff]
    %v222 = vld [vmem:[#allocation4 + $0x4e8] sm:$0xff]
    %v223 = vld [vmem:[#allocation4 + $0x4f0] sm:$0xff]
    %v224 = vld [vmem:[#allocation4 + $0x4f8] sm:$0xff]
    %v225 = vld [vmem:[#allocation4 + $0x500] sm:$0xff]
    %v226 = vld [vmem:[#allocation4 + $0x508] sm:$0xff]
    %v227 = vld [vmem:[#allocation4 + $0x510] sm:$0xff]
    %v228 = vld [vmem:[#allocation4 + $0x518] sm:$0xff]
    %v229 = vld [vmem:[#allocation4 + $0x520] sm:$0xff]
    %v230 = vld [vmem:[#allocation4 + $0x528] sm:$0xff]
    %v231 = vld [vmem:[#allocation4 + $0x530] sm:$0xff]
    %v232 = vld [vmem:[#allocation4 + $0x538] sm:$0xff]
    %v233 = vld [vmem:[#allocation4 + $0x540] sm:$0xff]
    %v234 = vld [vmem:[#allocation4 + $0x548] sm:$0xff]
    %v235 = vld [vmem:[#allocation4 + $0x550] sm:$0xff]
    %v236 = vld [vmem:[#allocation4 + $0x558] sm:$0xff]
    %v237 = vld [vmem:[#allocation4 + $0x560] sm:$0xff]
    %v238 = vld [vmem:[#allocation4 + $0x568] sm:$0xff]
    %v239 = vld [vmem:[#allocation4 + $0x570] sm:$0xff]
    %v240 = vld [vmem:[#allocation4 + $0x578] sm:$0xff]
    %v241 = vld [vmem:[#allocation4 + $0x580] sm:$0xff]
    %v242 = vld [vmem:[#allocation4 + $0x588] sm:$0xff]
    %v243 = vld [vmem:[#allocation4 + $0x590] sm:$0xff]
    %v244 = vld [vmem:[#allocation4 + $0x598] sm:$0xff]
    %v245 = vld [vmem:[#allocation4 + $0x5a0] sm:$0xff]
    %v246 = vld [vmem:[#allocation4 + $0x5a8] sm:$0xff]
    %v247 = vld [vmem:[#allocation4 + $0x5b0] sm:$0xff]
    %v248 = vld [vmem:[#allocation4 + $0x5b8] sm:$0xff]
    %v249 = vld [vmem:[#allocation4 + $0x5c0] sm:$0xff]
    %v250 = vld [vmem:[#allocation4 + $0x5c8] sm:$0xff]
    %v251 = vld [vmem:[#allocation4 + $0x5d0] sm:$0xff]
    %v252 = vld [vmem:[#allocation4 + $0x5d8] sm:$0xff]
    %v253 = vld [vmem:[#allocation4 + $0x5e0] sm:$0xff]
    %v254 = vld [vmem:[#allocation4 + $0x5e8] sm:$0xff]
    %v255 = vld [vmem:[#allocation4 + $0x5f0] sm:$0xff]
    %v256 = vld [vmem:[#allocation4 + $0x5f8] sm:$0xff]
    %v257 = vld [vmem:[#allocation4 + $0x600] sm:$0xff]
    %v258 = vld [vmem:[#allocation4 + $0x608] sm:$0xff]
    %v259 = vld [vmem:[#allocation4 + $0x610] sm:$0xff]
    %v260 = vld [vmem:[#allocation4 + $0x618] sm:$0xff]
    %v261 = vld [vmem:[#allocation4 + $0x620] sm:$0xff]
    %v262 = vld [vmem:[#allocation4 + $0x628] sm:$0xff]
    %v263 = vld [vmem:[#allocation4 + $0x630] sm:$0xff]
    %v264 = vld [vmem:[#allocation4 + $0x638] sm:$0xff]
    %v265 = vld [vmem:[#allocation4 + $0x640] sm:$0xff]
    %v266 = vld [vmem:[#allocation4 + $0x648] sm:$0xff]
    %v267 = vld [vmem:[#allocation4 + $0x650] sm:$0xff]
    %v268 = vld [vmem:[#allocation4 + $0x658] sm:$0xff]
    %v269 = vld [vmem:[#allocation4 + $0x660] sm:$0xff]
    %v270 = vld [vmem:[#allocation4 + $0x668] sm:$0xff]
    %v271 = vld [vmem:[#allocation4 + $0x670] sm:$0xff]
    %v272 = vld [vmem:[#allocation4 + $0x678] sm:$0xff]
    %v273 = vld [vmem:[#allocation4 + $0x680] sm:$0xff]
    %v274 = vld [vmem:[#allocation4 + $0x688] sm:$0xff]
    %v275 = vld [vmem:[#allocation4 + $0x690] sm:$0xff]
    %v276 = vld [vmem:[#allocation4 + $0x698] sm:$0xff]
    %v277 = vld [vmem:[#allocation4 + $0x6a0] sm:$0xff]
    %v278 = vld [vmem:[#allocation4 + $0x6a8] sm:$0xff]
    %v279 = vld [vmem:[#allocation4 + $0x6b0] sm:$0xff]
    %v280 = vld [vmem:[#allocation4 + $0x6b8] sm:$0xff]
    %v281 = vld [vmem:[#allocation4 + $0x6c0] sm:$0xff]
    %v282 = vld [vmem:[#allocation4 + $0x6c8] sm:$0xff]
    %v283 = vld [vmem:[#allocation4 + $0x6d0] sm:$0xff]
    %v284 = vld [vmem:[#allocation4 + $0x6d8] sm:$0xff]
    %v285 = vld [vmem:[#allocation4 + $0x6e0] sm:$0xff]
    %v286 = vld [vmem:[#allocation4 + $0x6e8] sm:$0xff]
    %v287 = vld [vmem:[#allocation4 + $0x6f0] sm:$0xff]
    %v288 = vld [vmem:[#allocation4 + $0x6f8] sm:$0xff]
    %v289 = vld [vmem:[#allocation4 + $0x700] sm:$0xff]
    %v290 = vld [vmem:[#allocation4 + $0x708] sm:$0xff]
    %v291 = vld [vmem:[#allocation4 + $0x710] sm:$0xff]
    %v292 = vld [vmem:[#allocation4 + $0x718] sm:$0xff]
    %v293 = vld [vmem:[#allocation4 + $0x720] sm:$0xff]
    %v294 = vld [vmem:[#allocation4 + $0x728] sm:$0xff]
    %v295 = vld [vmem:[#allocation4 + $0x730] sm:$0xff]
    %v296 = vld [vmem:[#allocation4 + $0x738] sm:$0xff]
    %v297 = vld [vmem:[#allocation4 + $0x740] sm:$0xff]
    %v298 = vld [vmem:[#allocation4 + $0x748] sm:$0xff]
    %v299 = vld [vmem:[#allocation4 + $0x750] sm:$0xff]
    %v300 = vld [vmem:[#allocation4 + $0x758] sm:$0xff]
    %v301 = vld [vmem:[#allocation4 + $0x760] sm:$0xff]
    %v302 = vld [vmem:[#allocation4 + $0x768] sm:$0xff]
    %v303 = vld [vmem:[#allocation4 + $0x770] sm:$0xff]
    %v304 = vld [vmem:[#allocation4 + $0x778] sm:$0xff]
    %v305 = vld [vmem:[#allocation4 + $0x780] sm:$0xff]
    %v306 = vld [vmem:[#allocation4 + $0x788] sm:$0xff]
    %v307 = vld [vmem:[#allocation4 + $0x790] sm:$0xff]
    %v308 = vld [vmem:[#allocation4 + $0x798] sm:$0xff]
    %v309 = vld [vmem:[#allocation4 + $0x7a0] sm:$0xff]
    %v310 = vld [vmem:[#allocation4 + $0x7a8] sm:$0xff]
    %v311 = vld [vmem:[#allocation4 + $0x7b0] sm:$0xff]
    %v312 = vld [vmem:[#allocation4 + $0x7b8] sm:$0xff]
    %v313 = vld [vmem:[#allocation4 + $0x7c0] sm:$0xff]
    %v314 = vld [vmem:[#allocation4 + $0x7c8] sm:$0xff]
    %v315 = vld [vmem:[#allocation4 + $0x7d0] sm:$0xff]
    %v316 = vld [vmem:[#allocation4 + $0x7d8] sm:$0xff]
    %v317 = vld [vmem:[#allocation4 + $0x7e0] sm:$0xff]
    %v318 = vld [vmem:[#allocation4 + $0x7e8] sm:$0xff]
    %v319 = vld [vmem:[#allocation4 + $0x7f0] sm:$0xff]
    %v320 = vld [vmem:[#allocation4 + $0x7f8] sm:$0xff]
    %321 = vmatpush.msra.mxu0 %v95
    %322 = vmatpush.msra.mxu0 %v93
    %323 = vmatpush.msra.mxu0 %v91
    %324 = vmatpush.msra.mxu0 %v89
    %325 = vmatpush.msra.mxu0 %v87
    %326 = vmatpush.msra.mxu0 %v85
    %327 = vmatpush.msra.mxu0 %v83
    %328 = vmatpush.msra.mxu0 %v81
    %329 = vmatpush.msra.mxu0 %v79
    %330 = vmatpush.msra.mxu0 %v77
    %331 = vmatpush.msra.mxu0 %v75
    %332 = vmatpush.msra.mxu0 %v73
    %333 = vmatpush.msra.mxu0 %v71
    %334 = vmatpush.msra.mxu0 %v69
    %335 = vmatpush.msra.mxu0 %v67
    %336 = vmatpush.msra.mxu0 %v65
    %337 = vmatmul.f32.gmra.mxu0 %v57
    %v338 = vpop.f32.mrf.mxu0
    %v339 = vadd.f32 0.0, %v338
    %340 = vdwg.mxu0
    %341 = vmatpush.msra.mxu0 %v127
    %342 = vmatpush.msra.mxu0 %v125
    %343 = vmatpush.msra.mxu0 %v123
    %344 = vmatpush.msra.mxu0 %v121
    %345 = vmatpush.msra.mxu0 %v119
    %346 = vmatpush.msra.mxu0 %v117
    %347 = vmatpush.msra.mxu0 %v115
    %348 = vmatpush.msra.mxu0 %v113
    %349 = vmatpush.msra.mxu0 %v111
    %350 = vmatpush.msra.mxu0 %v109
    %351 = vmatpush.msra.mxu0 %v107
    %352 = vmatpush.msra.mxu0 %v105
    %353 = vmatpush.msra.mxu0 %v103
    %354 = vmatpush.msra.mxu0 %v101
    %355 = vmatpush.msra.mxu0 %v99
    %356 = vmatpush.msra.mxu0 %v97
    %357 = vmatmul.f32.gmra.mxu0 %v58
    %v358 = vpop.f32.mrf.mxu0
    %v359 = vadd.f32 %v339, %v358
    %360 = vdwg.mxu0
    %361 = vmatpush.msra.mxu0 %v159
    %362 = vmatpush.msra.mxu0 %v157
    %363 = vmatpush.msra.mxu0 %v155
    %364 = vmatpush.msra.mxu0 %v153
    %365 = vmatpush.msra.mxu0 %v151
    %366 = vmatpush.msra.mxu0 %v149
    %367 = vmatpush.msra.mxu0 %v147
    %368 = vmatpush.msra.mxu0 %v145
    %369 = vmatpush.msra.mxu0 %v143
    %370 = vmatpush.msra.mxu0 %v141
    %371 = vmatpush.msra.mxu0 %v139
    %372 = vmatpush.msra.mxu0 %v137
    %373 = vmatpush.msra.mxu0 %v135
    %374 = vmatpush.msra.mxu0 %v133
    %375 = vmatpush.msra.mxu0 %v131
    %376 = vmatpush.msra.mxu0 %v129
    %377 = vmatmul.f32.gmra.mxu0 %v59
    %v378 = vpop.f32.mrf.mxu0
    %v379 = vadd.f32 %v359, %v378
    %380 = vdwg.mxu0
    %381 = vmatpush.msra.mxu0 %v191
    %382 = vmatpush.msra.mxu0 %v189
    %383 = vmatpush.msra.mxu0 %v187
    %384 = vmatpush.msra.mxu0 %v185
    %385 = vmatpush.msra.mxu0 %v183
    %386 = vmatpush.msra.mxu0 %v181
    %387 = vmatpush.msra.mxu0 %v179
    %388 = vmatpush.msra.mxu0 %v177
    %389 = vmatpush.msra.mxu0 %v175
    %390 = vmatpush.msra.mxu0 %v173
    %391 = vmatpush.msra.mxu0 %v171
    %392 = vmatpush.msra.mxu0 %v169
    %393 = vmatpush.msra.mxu0 %v167
    %394 = vmatpush.msra.mxu0 %v165
    %395 = vmatpush.msra.mxu0 %v163
    %396 = vmatpush.msra.mxu0 %v161
    %397 = vmatmul.f32.gmra.mxu0 %v60
    %v398 = vpop.f32.mrf.mxu0
    %v399 = vadd.f32 %v379, %v398
    %400 = vdwg.mxu0
    %401 = vmatpush.msra.mxu0 %v223
    %402 = vmatpush.msra.mxu0 %v221
    %403 = vmatpush.msra.mxu0 %v219
    %404 = vmatpush.msra.mxu0 %v217
    %405 = vmatpush.msra.mxu0 %v215
    %406 = vmatpush.msra.mxu0 %v213
    %407 = vmatpush.msra.mxu0 %v211
    %408 = vmatpush.msra.mxu0 %v209
    %409 = vmatpush.msra.mxu0 %v207
    %410 = vmatpush.msra.mxu0 %v205
    %411 = vmatpush.msra.mxu0 %v203
    %412 = vmatpush.msra.mxu0 %v201
    %413 = vmatpush.msra.mxu0 %v199
    %414 = vmatpush.msra.mxu0 %v197
    %415 = vmatpush.msra.mxu0 %v195
    %416 = vmatpush.msra.mxu0 %v193
    %417 = vmatmul.f32.gmra.mxu0 %v61
    %v418 = vpop.f32.mrf.mxu0
    %v419 = vadd.f32 %v399, %v418
    %420 = vdwg.mxu0
    %421 = vmatpush.msra.mxu0 %v255
    %422 = vmatpush.msra.mxu0 %v253
    %423 = vmatpush.msra.mxu0 %v251
    %424 = vmatpush.msra.mxu0 %v249
    %425 = vmatpush.msra.mxu0 %v247
    %426 = vmatpush.msra.mxu0 %v245
    %427 = vmatpush.msra.mxu0 %v243
    %428 = vmatpush.msra.mxu0 %v241
    %429 = vmatpush.msra.mxu0 %v239
    %430 = vmatpush.msra.mxu0 %v237
    %431 = vmatpush.msra.mxu0 %v235
    %432 = vmatpush.msra.mxu0 %v233
    %433 = vmatpush.msra.mxu0 %v231
    %434 = vmatpush.msra.mxu0 %v229
    %435 = vmatpush.msra.mxu0 %v227
    %436 = vmatpush.msra.mxu0 %v225
    %437 = vmatmul.f32.gmra.mxu0 %v62
    %v438 = vpop.f32.mrf.mxu0
    %v439 = vadd.f32 %v419, %v438
    %440 = vdwg.mxu0
    %441 = vmatpush.msra.mxu0 %v287
    %442 = vmatpush.msra.mxu0 %v285
    %443 = vmatpush.msra.mxu0 %v283
    %444 = vmatpush.msra.mxu0 %v281
    %445 = vmatpush.msra.mxu0 %v279
    %446 = vmatpush.msra.mxu0 %v277
    %447 = vmatpush.msra.mxu0 %v275
    %448 = vmatpush.msra.mxu0 %v273
    %449 = vmatpush.msra.mxu0 %v271
    %450 = vmatpush.msra.mxu0 %v269
    %451 = vmatpush.msra.mxu0 %v267
    %452 = vmatpush.msra.mxu0 %v265
    %453 = vmatpush.msra.mxu0 %v263
    %454 = vmatpush.msra.mxu0 %v261
    %455 = vmatpush.msra.mxu0 %v259
    %456 = vmatpush.msra.mxu0 %v257
    %457 = vmatmul.f32.gmra.mxu0 %v63
    %v458 = vpop.f32.mrf.mxu0
    %v459 = vadd.f32 %v439, %v458
    %460 = vdwg.mxu0
    %461 = vmatpush.msra.mxu0 %v319
    %462 = vmatpush.msra.mxu0 %v317
    %463 = vmatpush.msra.mxu0 %v315
    %464 = vmatpush.msra.mxu0 %v313
    %465 = vmatpush.msra.mxu0 %v311
    %466 = vmatpush.msra.mxu0 %v309
    %467 = vmatpush.msra.mxu0 %v307
    %468 = vmatpush.msra.mxu0 %v305
    %469 = vmatpush.msra.mxu0 %v303
    %470 = vmatpush.msra.mxu0 %v301
    %471 = vmatpush.msra.mxu0 %v299
    %472 = vmatpush.msra.mxu0 %v297
    %473 = vmatpush.msra.mxu0 %v295
    %474 = vmatpush.msra.mxu0 %v293
    %475 = vmatpush.msra.mxu0 %v291
    %476 = vmatpush.msra.mxu0 %v289
    %477 = vmatmul.f32.gmra.mxu0 %v64
    %v478 = vpop.f32.mrf.mxu0
    %v479 = vadd.f32 %v459, %v478
    %480 = vdwg.mxu0
    %481 = vmatpush.msra.mxu0 %v96
    %482 = vmatpush.msra.mxu0 %v94
    %483 = vmatpush.msra.mxu0 %v92
    %484 = vmatpush.msra.mxu0 %v90
    %485 = vmatpush.msra.mxu0 %v88
    %486 = vmatpush.msra.mxu0 %v86
    %487 = vmatpush.msra.mxu0 %v84
    %488 = vmatpush.msra.mxu0 %v82
    %489 = vmatpush.msra.mxu0 %v80
    %490 = vmatpush.msra.mxu0 %v78
    %491 = vmatpush.msra.mxu0 %v76
    %492 = vmatpush.msra.mxu0 %v74
    %493 = vmatpush.msra.mxu0 %v72
    %494 = vmatpush.msra.mxu0 %v70
    %495 = vmatpush.msra.mxu0 %v68
    %496 = vmatpush.msra.mxu0 %v66
    %497 = vmatmul.f32.gmra.mxu0 %v57
    %v498 = vpop.f32.mrf.mxu0
    %v499 = vadd.f32 0.0, %v498
    %500 = vdwg.mxu0
    %501 = vmatpush.msra.mxu0 %v128
    %502 = vmatpush.msra.mxu0 %v126
    %503 = vmatpush.msra.mxu0 %v124
    %504 = vmatpush.msra.mxu0 %v122
    %505 = vmatpush.msra.mxu0 %v120
    %506 = vmatpush.msra.mxu0 %v118
    %507 = vmatpush.msra.mxu0 %v116
    %508 = vmatpush.msra.mxu0 %v114
    %509 = vmatpush.msra.mxu0 %v112
    %510 = vmatpush.msra.mxu0 %v110
    %511 = vmatpush.msra.mxu0 %v108
    %512 = vmatpush.msra.mxu0 %v106
    %513 = vmatpush.msra.mxu0 %v104
    %514 = vmatpush.msra.mxu0 %v102
    %515 = vmatpush.msra.mxu0 %v100
    %516 = vmatpush.msra.mxu0 %v98
    %517 = vmatmul.f32.gmra.mxu0 %v58
    %v518 = vpop.f32.mrf.mxu0
    %v519 = vadd.f32 %v499, %v518
    %520 = vdwg.mxu0
    %521 = vmatpush.msra.mxu0 %v160
    %522 = vmatpush.msra.mxu0 %v158
    %523 = vmatpush.msra.mxu0 %v156
    %524 = vmatpush.msra.mxu0 %v154
    %525 = vmatpush.msra.mxu0 %v152
    %526 = vmatpush.msra.mxu0 %v150
    %527 = vmatpush.msra.mxu0 %v148
    %528 = vmatpush.msra.mxu0 %v146
    %529 = vmatpush.msra.mxu0 %v144
    %530 = vmatpush.msra.mxu0 %v142
    %531 = vmatpush.msra.mxu0 %v140
    %532 = vmatpush.msra.mxu0 %v138
    %533 = vmatpush.msra.mxu0 %v136
    %534 = vmatpush.msra.mxu0 %v134
    %535 = vmatpush.msra.mxu0 %v132
    %536 = vmatpush.msra.mxu0 %v130
    %537 = vmatmul.f32.gmra.mxu0 %v59
    %v538 = vpop.f32.mrf.mxu0
    %v539 = vadd.f32 %v519, %v538
    %540 = vdwg.mxu0
    %541 = vmatpush.msra.mxu0 %v192
    %542 = vmatpush.msra.mxu0 %v190
    %543 = vmatpush.msra.mxu0 %v188
    %544 = vmatpush.msra.mxu0 %v186
    %545 = vmatpush.msra.mxu0 %v184
    %546 = vmatpush.msra.mxu0 %v182
    %547 = vmatpush.msra.mxu0 %v180
    %548 = vmatpush.msra.mxu0 %v178
    %549 = vmatpush.msra.mxu0 %v176
    %550 = vmatpush.msra.mxu0 %v174
    %551 = vmatpush.msra.mxu0 %v172
    %552 = vmatpush.msra.mxu0 %v170
    %553 = vmatpush.msra.mxu0 %v168
    %554 = vmatpush.msra.mxu0 %v166
    %555 = vmatpush.msra.mxu0 %v164
    %556 = vmatpush.msra.mxu0 %v162
    %557 = vmatmul.f32.gmra.mxu0 %v60
    %v558 = vpop.f32.mrf.mxu0
    %v559 = vadd.f32 %v539, %v558
    %560 = vdwg.mxu0
    %561 = vmatpush.msra.mxu0 %v224
    %562 = vmatpush.msra.mxu0 %v222
    %563 = vmatpush.msra.mxu0 %v220
    %564 = vmatpush.msra.mxu0 %v218
    %565 = vmatpush.msra.mxu0 %v216
    %566 = vmatpush.msra.mxu0 %v214
    %567 = vmatpush.msra.mxu0 %v212
    %568 = vmatpush.msra.mxu0 %v210
    %569 = vmatpush.msra.mxu0 %v208
    %570 = vmatpush.msra.mxu0 %v206
    %571 = vmatpush.msra.mxu0 %v204
    %572 = vmatpush.msra.mxu0 %v202
    %573 = vmatpush.msra.mxu0 %v200
    %574 = vmatpush.msra.mxu0 %v198
    %575 = vmatpush.msra.mxu0 %v196
    %576 = vmatpush.msra.mxu0 %v194
    %577 = vmatmul.f32.gmra.mxu0 %v61
    %v578 = vpop.f32.mrf.mxu0
    %v579 = vadd.f32 %v559, %v578
    %580 = vdwg.mxu0
    %581 = vmatpush.msra.mxu0 %v256
    %582 = vmatpush.msra.mxu0 %v254
    %583 = vmatpush.msra.mxu0 %v252
    %584 = vmatpush.msra.mxu0 %v250
    %585 = vmatpush.msra.mxu0 %v248
    %586 = vmatpush.msra.mxu0 %v246
    %587 = vmatpush.msra.mxu0 %v244
    %588 = vmatpush.msra.mxu0 %v242
    %589 = vmatpush.msra.mxu0 %v240
    %590 = vmatpush.msra.mxu0 %v238
    %591 = vmatpush.msra.mxu0 %v236
    %592 = vmatpush.msra.mxu0 %v234
    %593 = vmatpush.msra.mxu0 %v232
    %594 = vmatpush.msra.mxu0 %v230
    %595 = vmatpush.msra.mxu0 %v228
    %596 = vmatpush.msra.mxu0 %v226
    %597 = vmatmul.f32.gmra.mxu0 %v62
    %v598 = vpop.f32.mrf.mxu0
    %v599 = vadd.f32 %v579, %v598
    %600 = vdwg.mxu0
    %601 = vmatpush.msra.mxu0 %v288
    %602 = vmatpush.msra.mxu0 %v286
    %603 = vmatpush.msra.mxu0 %v284
    %604 = vmatpush.msra.mxu0 %v282
    %605 = vmatpush.msra.mxu0 %v280
    %606 = vmatpush.msra.mxu0 %v278
    %607 = vmatpush.msra.mxu0 %v276
    %608 = vmatpush.msra.mxu0 %v274
    %609 = vmatpush.msra.mxu0 %v272
    %610 = vmatpush.msra.mxu0 %v270
    %611 = vmatpush.msra.mxu0 %v268
    %612 = vmatpush.msra.mxu0 %v266
    %613 = vmatpush.msra.mxu0 %v264
    %614 = vmatpush.msra.mxu0 %v262
    %615 = vmatpush.msra.mxu0 %v260
    %616 = vmatpush.msra.mxu0 %v258
    %617 = vmatmul.f32.gmra.mxu0 %v63
    %v618 = vpop.f32.mrf.mxu0
    %v619 = vadd.f32 %v599, %v618
    %620 = vdwg.mxu0
    %621 = vmatpush.msra.mxu0 %v320
    %622 = vmatpush.msra.mxu0 %v318
    %623 = vmatpush.msra.mxu0 %v316
    %624 = vmatpush.msra.mxu0 %v314
    %625 = vmatpush.msra.mxu0 %v312
    %626 = vmatpush.msra.mxu0 %v310
    %627 = vmatpush.msra.mxu0 %v308
    %628 = vmatpush.msra.mxu0 %v306
    %629 = vmatpush.msra.mxu0 %v304
    %630 = vmatpush.msra.mxu0 %v302
    %631 = vmatpush.msra.mxu0 %v300
    %632 = vmatpush.msra.mxu0 %v298
    %633 = vmatpush.msra.mxu0 %v296
    %634 = vmatpush.msra.mxu0 %v294
    %635 = vmatpush.msra.mxu0 %v292
    %636 = vmatpush.msra.mxu0 %v290
    %637 = vmatmul.f32.gmra.mxu0 %v64
    %v638 = vpop.f32.mrf.mxu0
    %v639 = vadd.f32 %v619, %v638
    %640 = vdwg.mxu0
    %v641 = vmax.f32 %v479, 0.0
    %v642 = vmax.f32 %v639, 0.0
    %v643 = vld [vmem:[#allocation6] sm:$0x3]
    %v645 = vperm.slane %v643, 0
    %v646 = vperm.slane %v643, 1
    %v649 = vmul.f32 %v641, %v645
    %v650 = vmul.f32 %v642, %v646
    %v651 = vadd.f32 %v649, %v650
    %652 = vadd.xlane.f32.xlu0 %v651
    %v653 = vpop.xlane.xlu0 %652
    %v654 = vmax.f32 %v653, 0.0
    %vm655 = vcmask 7168
    %656 = vst.msk [vmem:[%s3] sm:$0xff] %vm655, %v654
    // Predicated region
    $region26: #{mlp_v_forward.1} parent=1 // pred_check
      _
    $region27: #{mlp_v_forward.1} parent=1 // pred_check_branch
      %658 = sbr.rel (0) target = $region29
    $region28: #{mlp_v_forward.1} parent=1 // pred_region
      _
    $region29: #{mlp_v_forward.1} parent=1 // pred_fallthru
      _
    // Predicated region
    $region30: #{mlp_v_forward.1} parent=1 // pred_check
      _
    $region31: #{mlp_v_forward.1} parent=1 // pred_check_branch
      %660 = sbr.rel (0) target = $region33
    $region32: #{mlp_v_forward.1} parent=1 // pred_region
      _
    $region33: #{mlp_v_forward.1} parent=1 // pred_fallthru
      _
    %661 = vsyncpa [#allocation3], 1
    %662 = vsyncpa [#allocation5], 1

</llo_original>
